<compile_context>
chip_gen: v5e
topology: v5e:2x2
jax: 0.10.0
libtpu: 0.0.40
codegen_flags: <defaults>
</compile_context>

<pallas_src>
import functools

import jax
import jax.numpy as jnp
from jax import lax
from jax.experimental import pallas as pl
from jax.experimental.pallas import tpu as pltpu


# ---------------------------------------------------------------------------
# Kernel A: per-metapath projection.
#   feat  = h @ W                      (bf16, lanes zero-padded to Dp)
#   er    = h @ (W @ attn_r)           dst-side attention term   (node, head)
#   el_t  = (W @ attn_l)^T @ h^T       src-side attention term   (head, node)
# One MXU matmul per quantity; no per-head loops, no transposes in-kernel.
# ---------------------------------------------------------------------------
def project_kernel(h_ref, ht_ref, w_ref, br_ref, blt_ref,
                   feat_ref, er_ref, elt_ref):
    x = h_ref[...]                                                # (TN, Din) bf16
    feat = jnp.dot(x, w_ref[0], preferred_element_type=jnp.float32)   # (TN, Dp)
    feat_ref[0] = feat.astype(feat_ref.dtype)
    er_ref[0] = jnp.dot(x, br_ref[0], preferred_element_type=jnp.float32)        # (TN, H)
    elt_ref[0] = jnp.dot(blt_ref[0], ht_ref[...], preferred_element_type=jnp.float32)  # (H, TN)


# ---------------------------------------------------------------------------
# Kernel B: flash-style GAT attention per metapath.
#   e[i,j]  = LeakyReLU(er[i] + el[j])   per head, masked by adjacency
#   alpha   = online softmax over src tiles (m/l scratch)
#   acc    += sum_h mask_h(lane) * (alpha_h @ feat)   full-width MXU pass per head
#   out     = ELU(acc / l + bias), written once per dst tile (lane-dense, padded).
# ---------------------------------------------------------------------------
def gat_attn_kernel(adj_ref, er_ref, elt_ref, feat_ref, bias_ref, o_ref,
                    m_scr, l_scr, acc_scr, *, num_heads, out_size, d_real,
                    negative_slope=0.2):
    j = pl.program_id(2)
    dp = acc_scr.shape[-1]

    @pl.when(j == 0)
    def _init():
        m_scr[...] = jnp.full_like(m_scr, -1e30)
        l_scr[...] = jnp.zeros_like(l_scr)
        acc_scr[...] = jnp.zeros_like(acc_scr)

    # TODO(synk): feat_drop / attn_drop are dropout layers -> identity (eval mode).
    adj = adj_ref[0]                                # (TD, TS) bf16
    mask = adj > 0
    er = er_ref[0]                                  # (TD, H) f32
    elt = elt_ref[0]                                # (H, TS) f32
    feat = feat_ref[0]                              # (TS, Dp) bf16

    lane = lax.broadcasted_iota(jnp.int32, (1, dp), 1)
    corr_full = jnp.zeros((er.shape[0], dp), jnp.float32)
    upd_full = jnp.zeros((er.shape[0], dp), jnp.float32)

    for hh in range(num_heads):                     # static unroll; H is small
        head_mask = jnp.where(
            (lane >= hh * out_size) & (lane < (hh + 1) * out_size), 1.0, 0.0)   # (1, Dp)
        e = er[:, hh:hh + 1] + elt[hh:hh + 1, :]                                 # (TD, TS)
        e = jnp.where(e > 0, e, negative_slope * e)                              # LeakyReLU
        e = jnp.where(mask, e, -1e30)
        m_prev = m_scr[hh]                                                       # (TD, 1)
        m_new = jnp.maximum(m_prev, jnp.max(e, axis=-1, keepdims=True))
        corr = jnp.exp(m_prev - m_new)                                           # (TD, 1)
        p = jnp.where(mask, jnp.exp(e - m_new), 0.0)                             # (TD, TS)
        l_scr[hh] = corr * l_scr[hh] + jnp.sum(p, axis=-1, keepdims=True)
        m_scr[hh] = m_new
        # Full-width (Dp >= 128 lanes) MXU pass, masked to this head's lanes.
        pf = jnp.dot(p.astype(feat.dtype), feat, preferred_element_type=jnp.float32)
        corr_full = corr_full + corr * head_mask
        upd_full = upd_full + pf * head_mask

    acc_scr[...] = corr_full * acc_scr[...] + upd_full

    @pl.when(j == pl.num_programs(2) - 1)
    def _finish():
        # Expand per-head softmax denominators to the full padded lane width.
        l_full = jnp.where(lane >= d_real, 1.0, 0.0)          # pad lanes -> 1 (stay 0 after *0)
        for hh in range(num_heads):
            hm = jnp.where((lane >= hh * out_size) & (lane < (hh + 1) * out_size), 1.0, 0.0)
            l_full = l_full + l_scr[hh] * hm
        inv = pl.reciprocal(jnp.maximum(l_full, 1e-9), approx=True)
        out = acc_scr[...] * inv + bias_ref[0]
        out = jnp.where(out > 0, out, jnp.exp(jnp.minimum(out, 0.0)) - 1.0)      # ELU
        o_ref[0] = out.astype(o_ref.dtype)


# ---------------------------------------------------------------------------
# Semantic attention pass (a): per-metapath score, tiled reduction over nodes.
#   w_m = (column_sum_n tanh(z_m @ W1 + b1)) @ W2 / N
# ---------------------------------------------------------------------------
def sem_score_kernel(z_ref, w1_ref, b1_ref, w2_ref, w_ref, acc_ref, *, inv_n):
    n = pl.program_id(1)

    @pl.when(n == 0)
    def _init():
        acc_ref[...] = jnp.zeros_like(acc_ref)

    hid = jnp.tanh(jnp.dot(z_ref[0], w1_ref[...],
                           preferred_element_type=jnp.float32) + b1_ref[...])
    acc_ref[...] += jnp.sum(hid, axis=0, keepdims=True)          # (1, hidden)

    @pl.when(n == pl.num_programs(1) - 1)
    def _finish():
        score = jnp.dot(acc_ref[...], w2_ref[...],
                        preferred_element_type=jnp.float32) * inv_n   # (1, 1)
        w_ref[0] = jnp.broadcast_to(score, (1, 128))


# ---------------------------------------------------------------------------
# Semantic attention pass (b): beta = softmax_m(w); out = sum_m beta_m * z_m
# (tiled over nodes, fully parallel).
# ---------------------------------------------------------------------------
def sem_combine_kernel(w_ref, z_ref, o_ref, *, num_paths):
    wv = w_ref[...]                                              # (M, 1, 128)
    mmax = jnp.max(wv, axis=0, keepdims=True)
    ev = jnp.exp(wv - mmax)
    beta = ev * pl.reciprocal(jnp.sum(ev, axis=0, keepdims=True), approx=True)
    out = beta[0, :, 0:1] * z_ref[0]
    for m in range(1, num_paths):
        out = out + beta[m, :, 0:1] * z_ref[m]
    o_ref[...] = out


# ---------------------------------------------------------------------------
# Wrapper
# ---------------------------------------------------------------------------
def _pick_tile(n, pref):
    if n <= pref:
        return n
    assert n % pref == 0, f"N={n} must be a multiple of tile {pref}"
    return pref


def han_layer_forward(h, adjs, gat_W, gat_al, gat_ar, gat_b,
                      sem_W1, sem_b1, sem_W2, *, num_heads, out_size):
    M, N, _ = adjs.shape
    Din = h.shape[1]
    HD = num_heads * out_size
    hidden = sem_W1.shape[1]
    Dp = max(128, ((HD + 127) // 128) * 128)        # lane-dense / padded feature width

    # Tile sizes: src tile is the lane dim of the adjacency tile (multiple of 128 when
    # tiling).  Sized so double-buffered tiles stay far below v7x's 64 MiB VMEM.
    TD = _pick_tile(N, 256)      # dst tile (sublanes)
    TS = _pick_tile(N, 512)      # src tile (lanes of adjacency)
    TN = _pick_tile(N, 256)      # node tile for projection / semantic passes

    f32, bf16 = jnp.float32, jnp.bfloat16
    vmem_lim = 32 * 1024 * 1024

    # ---- host-side (trace-time) parameter prep -----------------------------
    W_pad = jnp.zeros((M, Din, Dp), f32).at[:, :, :HD].set(gat_W)
    bias_pad = jnp.zeros((M, 1, Dp), f32).at[:, :, :HD].set(gat_b)
    # Fold attention vectors through the projection: el = h @ (W @ a_l), er = h @ (W @ a_r).
    W_heads = gat_W.reshape(M, Din, num_heads, out_size)
    B_l = jnp.einsum("mdhe,mhe->mdh", W_heads, gat_al)           # (M, Din, H)  src term
    B_r = jnp.einsum("mdhe,mhe->mdh", W_heads, gat_ar)           # (M, Din, H)  dst term
    B_lT = jnp.transpose(B_l, (0, 2, 1))                         # (M, H, Din)

    h_b = h.astype(bf16)
    hT_b = h.T.astype(bf16)
    W_pad_b = W_pad.astype(bf16)
    B_r_b = B_r.astype(bf16)
    B_lT_b = B_lT.astype(bf16)
    adj_b = adjs.astype(bf16)                                    # halve adjacency HBM traffic

    # ---- Kernel A: projection + attention terms ----------------------------
    feat, er, el_t = pl.pallas_call(
        project_kernel,
        out_shape=(jax.ShapeDtypeStruct((M, N, Dp), bf16),
                   jax.ShapeDtypeStruct((M, N, num_heads), f32),
                   jax.ShapeDtypeStruct((M, num_heads, N), f32)),
        grid=(M, N // TN),
        in_specs=[
            pl.BlockSpec((TN, Din), lambda m, n: (n, 0)),
            pl.BlockSpec((Din, TN), lambda m, n: (0, n)),
            pl.BlockSpec((1, Din, Dp), lambda m, n: (m, 0, 0)),
            pl.BlockSpec((1, Din, num_heads), lambda m, n: (m, 0, 0)),
            pl.BlockSpec((1, num_heads, Din), lambda m, n: (m, 0, 0)),
        ],
        out_specs=(
            pl.BlockSpec((1, TN, Dp), lambda m, n: (m, n, 0)),
            pl.BlockSpec((1, TN, num_heads), lambda m, n: (m, n, 0)),
            pl.BlockSpec((1, num_heads, TN), lambda m, n: (m, 0, n)),
        ),
        compiler_params=pltpu.CompilerParams(
            dimension_semantics=("parallel", "parallel"),
            vmem_limit_bytes=vmem_lim),
    )(h_b, hT_b, W_pad_b, B_r_b, B_lT_b)

    # ---- Kernel B: tiled GAT attention with online softmax -----------------
    z_pad = pl.pallas_call(
        functools.partial(gat_attn_kernel, num_heads=num_heads,
                          out_size=out_size, d_real=HD),
        out_shape=jax.ShapeDtypeStruct((M, N, Dp), f32),
        grid=(M, N // TD, N // TS),
        in_specs=[
            pl.BlockSpec((1, TD, TS), lambda m, i, j: (m, i, j)),          # adjacency tile
            pl.BlockSpec((1, TD, num_heads), lambda m, i, j: (m, i, 0)),   # er (dst)
            pl.BlockSpec((1, num_heads, TS), lambda m, i, j: (m, 0, j)),   # el^T (src)
            pl.BlockSpec((1, TS, Dp), lambda m, i, j: (m, j, 0)),          # projected feats
            pl.BlockSpec((1, 1, Dp), lambda m, i, j: (m, 0, 0)),           # bias
        ],
        out_specs=pl.BlockSpec((1, TD, Dp), lambda m, i, j: (m, i, 0)),
        scratch_shapes=[
            pltpu.VMEM((num_heads, TD, 1), f32),   # running max
            pltpu.VMEM((num_heads, TD, 1), f32),   # running sum
            pltpu.VMEM((TD, Dp), f32),             # accumulator
        ],
        compiler_params=pltpu.CompilerParams(
            dimension_semantics=("parallel", "parallel", "arbitrary"),
            vmem_limit_bytes=vmem_lim),
    )(adj_b, er, el_t, feat, bias_pad)

    # ---- Semantic attention: pass (a) per-metapath score -------------------
    W1_pad = jnp.zeros((Dp, hidden), f32).at[:HD, :].set(sem_W1)
    w_scores = pl.pallas_call(
        functools.partial(sem_score_kernel, inv_n=1.0 / N),
        out_shape=jax.ShapeDtypeStruct((M, 1, 128), f32),
        grid=(M, N // TN),
        in_specs=[
            pl.BlockSpec((1, TN, Dp), lambda m, n: (m, n, 0)),
            pl.BlockSpec((Dp, hidden), lambda m, n: (0, 0)),
            pl.BlockSpec((1, hidden), lambda m, n: (0, 0)),
            pl.BlockSpec((hidden, 1), lambda m, n: (0, 0)),
        ],
        out_specs=pl.BlockSpec((1, 1, 128), lambda m, n: (m, 0, 0)),
        scratch_shapes=[pltpu.VMEM((1, hidden), f32)],
        compiler_params=pltpu.CompilerParams(
            dimension_semantics=("parallel", "arbitrary"),
            vmem_limit_bytes=vmem_lim),
    )(z_pad, W1_pad, sem_b1, sem_W2)

    # ---- Semantic attention: pass (b) weighted combine ----------------------
    out_pad = pl.pallas_call(
        functools.partial(sem_combine_kernel, num_paths=M),
        out_shape=jax.ShapeDtypeStruct((N, Dp), f32),
        grid=(N // TN,),
        in_specs=[
            pl.BlockSpec((M, 1, 128), lambda n: (0, 0, 0)),
            pl.BlockSpec((M, TN, Dp), lambda n: (0, n, 0)),
        ],
        out_specs=pl.BlockSpec((TN, Dp), lambda n: (n, 0)),
        compiler_params=pltpu.CompilerParams(
            dimension_semantics=("parallel",),
            vmem_limit_bytes=vmem_lim),
    )(w_scores, z_pad)

    return out_pad[:, :HD]


def init_params(key, num_metapaths, in_size, out_size, num_heads, hidden=128):
    D = out_size * num_heads
    ks = jax.random.split(key, 5)
    gat_W = jax.random.normal(ks[0], (num_metapaths, in_size, D), jnp.float32) / jnp.sqrt(
        jnp.float32(in_size))
    gat_al = jax.random.normal(ks[1], (num_metapaths, num_heads, out_size), jnp.float32) * 0.1
    gat_ar = jax.random.normal(ks[2], (num_metapaths, num_heads, out_size), jnp.float32) * 0.1
    gat_b = jnp.zeros((num_metapaths, 1, D), jnp.float32)
    sem_W1 = jax.random.normal(ks[3], (D, hidden), jnp.float32) / jnp.sqrt(jnp.float32(D))
    sem_b1 = jnp.zeros((1, hidden), jnp.float32)
    sem_W2 = jax.random.normal(ks[4], (hidden, 1), jnp.float32) / jnp.sqrt(jnp.float32(hidden))
    return gat_W, gat_al, gat_ar, gat_b, sem_W1, sem_b1, sem_W2


if __name__ == "__main__":
    key = jax.random.PRNGKey(0)
    N, in_size, out_size, num_heads, M = 16, 8, 8, 2, 2

    k_h, k_adj, k_p = jax.random.split(key, 3)
    h = jax.random.normal(k_h, (N, in_size), jnp.float32)

    # TODO(synk): dgl.metapath_reachable_graph has no Pallas equivalent; the coalesced
    # metapath graphs are supplied directly as dense adjacency (self loops added so
    # no node has zero in-degree).
    adj_rand = (jax.random.uniform(k_adj, (M, N, N)) < 0.3).astype(jnp.float32)
    eye = jnp.eye(N, dtype=jnp.float32)[None, :, :]
    adjs = jnp.clip(adj_rand + eye, 0.0, 1.0)

    params = init_params(k_p, M, in_size, out_size, num_heads)
    out = han_layer_forward(h, adjs, *params, num_heads=num_heads, out_size=out_size)
    out = jax.block_until_ready(out)

    assert out.shape == (N, out_size * num_heads)
    assert bool(jnp.all(jnp.isfinite(out)))
    print("KERNEL_OK")
</pallas_src>

<mosaic_0001>
module attributes {stable_mosaic.version = 11 : i64} {
  func.func @project_kernel(%arg0: i32, %arg1: i32, %arg2: memref<16x8xbf16, #tpu.memory_space<vmem>>, %arg3: memref<8x16xbf16, #tpu.memory_space<vmem>>, %arg4: memref<1x8x128xbf16, #tpu.memory_space<vmem>>, %arg5: memref<1x8x2xbf16, #tpu.memory_space<vmem>>, %arg6: memref<1x2x8xbf16, #tpu.memory_space<vmem>>, %arg7: memref<1x16x128xbf16, #tpu.memory_space<vmem>>, %arg8: memref<1x16x2xf32, #tpu.memory_space<vmem>>, %arg9: memref<1x2x16xf32, #tpu.memory_space<vmem>>) attributes {dimension_semantics = [#tpu.dimension_semantics<parallel>, #tpu.dimension_semantics<parallel>], iteration_bounds = array<i64: 2, 1>, scalar_prefetch = 0 : i64, scratch_operands = 0 : i64, tpu.core_type = #tpu.core_type<tc>, window_params = [{transform_indices = @transform_0, window_bounds = array<i64: 16, 8>}, {transform_indices = @transform_1, window_bounds = array<i64: 8, 16>}, {transform_indices = @transform_2, window_bounds = array<i64: 1, 8, 128>}, {transform_indices = @transform_3, window_bounds = array<i64: 1, 8, 2>}, {transform_indices = @transform_4, window_bounds = array<i64: 1, 2, 8>}, {transform_indices = @transform_5, window_bounds = array<i64: 1, 16, 128>}, {transform_indices = @transform_6, window_bounds = array<i64: 1, 16, 2>}, {transform_indices = @transform_7, window_bounds = array<i64: 1, 2, 16>}]} {
    %c0 = arith.constant 0 : index
    %c0_0 = arith.constant 0 : index
    %0 = vector.load %arg2[%c0, %c0_0] : memref<16x8xbf16, #tpu.memory_space<vmem>>, vector<16x8xbf16>
    %c0_1 = arith.constant 0 : index
    %c0_2 = arith.constant 0 : index
    %c0_3 = arith.constant 0 : index
    %1 = vector.load %arg4[%c0_1, %c0_2, %c0_3] : memref<1x8x128xbf16, #tpu.memory_space<vmem>>, vector<1x8x128xbf16>
    %2 = vector.shape_cast %1 : vector<1x8x128xbf16> to vector<8x128xbf16>
    %cst = arith.constant dense<0.000000e+00> : vector<16x128xf32>
    %3 = tpu.matmul %0, %2, %cst {dimension_numbers = #tpu.dot_dimension_numbers<[1], [0], [0], [1], [0, 0, 1, 1], [], []>} : vector<16x8xbf16>, vector<8x128xbf16>, vector<16x128xf32> -> vector<16x128xf32>
    %4 = arith.truncf %3 : vector<16x128xf32> to vector<16x128xbf16>
    %c0_4 = arith.constant 0 : index
    %c0_5 = arith.constant 0 : index
    %c0_6 = arith.constant 0 : index
    %5 = vector.load %arg7[%c0_4, %c0_5, %c0_6] : memref<1x16x128xbf16, #tpu.memory_space<vmem>>, vector<1x16x128xbf16>
    %6 = vector.shape_cast %5 : vector<1x16x128xbf16> to vector<16x128xbf16>
    %7 = vector.shape_cast %4 : vector<16x128xbf16> to vector<1x16x128xbf16>
    tpu.vector_store %arg7[%c0_4, %c0_5, %c0_6], %7 {strides = array<i32>} : memref<1x16x128xbf16, #tpu.memory_space<vmem>>, vector<1x16x128xbf16>,
    %c0_7 = arith.constant 0 : index
    %c0_8 = arith.constant 0 : index
    %c0_9 = arith.constant 0 : index
    %8 = vector.load %arg5[%c0_7, %c0_8, %c0_9] : memref<1x8x2xbf16, #tpu.memory_space<vmem>>, vector<1x8x2xbf16>
    %9 = vector.shape_cast %8 : vector<1x8x2xbf16> to vector<8x2xbf16>
    %cst_10 = arith.constant dense<0.000000e+00> : vector<16x2xf32>
    %10 = tpu.matmul %0, %9, %cst_10 {dimension_numbers = #tpu.dot_dimension_numbers<[1], [0], [0], [1], [0, 0, 1, 1], [], []>} : vector<16x8xbf16>, vector<8x2xbf16>, vector<16x2xf32> -> vector<16x2xf32>
    %c0_11 = arith.constant 0 : index
    %c0_12 = arith.constant 0 : index
    %c0_13 = arith.constant 0 : index
    %11 = vector.load %arg8[%c0_11, %c0_12, %c0_13] : memref<1x16x2xf32, #tpu.memory_space<vmem>>, vector<1x16x2xf32>
    %12 = vector.shape_cast %11 : vector<1x16x2xf32> to vector<16x2xf32>
    %13 = vector.shape_cast %10 : vector<16x2xf32> to vector<1x16x2xf32>
    tpu.vector_store %arg8[%c0_11, %c0_12, %c0_13], %13 {strides = array<i32>} : memref<1x16x2xf32, #tpu.memory_space<vmem>>, vector<1x16x2xf32>,
    %c0_14 = arith.constant 0 : index
    %c0_15 = arith.constant 0 : index
    %c0_16 = arith.constant 0 : index
    %14 = vector.load %arg6[%c0_14, %c0_15, %c0_16] : memref<1x2x8xbf16, #tpu.memory_space<vmem>>, vector<1x2x8xbf16>
    %15 = vector.shape_cast %14 : vector<1x2x8xbf16> to vector<2x8xbf16>
    %c0_17 = arith.constant 0 : index
    %c0_18 = arith.constant 0 : index
    %16 = vector.load %arg3[%c0_17, %c0_18] : memref<8x16xbf16, #tpu.memory_space<vmem>>, vector<8x16xbf16>
    %cst_19 = arith.constant dense<0.000000e+00> : vector<2x16xf32>
    %17 = tpu.matmul %15, %16, %cst_19 {dimension_numbers = #tpu.dot_dimension_numbers<[1], [0], [0], [1], [0, 0, 1, 1], [], []>} : vector<2x8xbf16>, vector<8x16xbf16>, vector<2x16xf32> -> vector<2x16xf32>
    %c0_20 = arith.constant 0 : index
    %c0_21 = arith.constant 0 : index
    %c0_22 = arith.constant 0 : index
    %18 = vector.load %arg9[%c0_20, %c0_21, %c0_22] : memref<1x2x16xf32, #tpu.memory_space<vmem>>, vector<1x2x16xf32>
    %19 = vector.shape_cast %18 : vector<1x2x16xf32> to vector<2x16xf32>
    %20 = vector.shape_cast %17 : vector<2x16xf32> to vector<1x2x16xf32>
    tpu.vector_store %arg9[%c0_20, %c0_21, %c0_22], %20 {strides = array<i32>} : memref<1x2x16xf32, #tpu.memory_space<vmem>>, vector<1x2x16xf32>,
    return
  }
  func.func @transform_0(%arg0: i32, %arg1: i32) -> (i32, i32) {
    %c0_i32 = arith.constant 0 : i32
    %c0_i32_0 = arith.constant 0 : i32
    return %arg1, %c0_i32 : i32, i32
  }
  func.func @transform_1(%arg0: i32, %arg1: i32) -> (i32, i32) {
    %c0_i32 = arith.constant 0 : i32
    %c0_i32_0 = arith.constant 0 : i32
    return %c0_i32, %arg1 : i32, i32
  }
  func.func @transform_2(%arg0: i32, %arg1: i32) -> (i32, i32, i32) {
    %c0_i32 = arith.constant 0 : i32
    %c0_i32_0 = arith.constant 0 : i32
    %c0_i32_1 = arith.constant 0 : i32
    return %arg0, %c0_i32, %c0_i32_0 : i32, i32, i32
  }
  func.func @transform_3(%arg0: i32, %arg1: i32) -> (i32, i32, i32) {
    %c0_i32 = arith.constant 0 : i32
    %c0_i32_0 = arith.constant 0 : i32
    %c0_i32_1 = arith.constant 0 : i32
    return %arg0, %c0_i32, %c0_i32_0 : i32, i32, i32
  }
  func.func @transform_4(%arg0: i32, %arg1: i32) -> (i32, i32, i32) {
    %c0_i32 = arith.constant 0 : i32
    %c0_i32_0 = arith.constant 0 : i32
    %c0_i32_1 = arith.constant 0 : i32
    return %arg0, %c0_i32, %c0_i32_0 : i32, i32, i32
  }
  func.func @transform_5(%arg0: i32, %arg1: i32) -> (i32, i32, i32) {
    %c0_i32 = arith.constant 0 : i32
    %c0_i32_0 = arith.constant 0 : i32
    return %arg0, %arg1, %c0_i32 : i32, i32, i32
  }
  func.func @transform_6(%arg0: i32, %arg1: i32) -> (i32, i32, i32) {
    %c0_i32 = arith.constant 0 : i32
    %c0_i32_0 = arith.constant 0 : i32
    return %arg0, %arg1, %c0_i32 : i32, i32, i32
  }
  func.func @transform_7(%arg0: i32, %arg1: i32) -> (i32, i32, i32) {
    %c0_i32 = arith.constant 0 : i32
    %c0_i32_0 = arith.constant 0 : i32
    return %arg0, %c0_i32, %arg1 : i32, i32, i32
  }
}

</mosaic_0001>

<llo_original>
// kernel: tpu_custom_call.1
$region0: #{tpu_custom_call.1}
  #allocation0 [shape = 'u32[]', space=smem, size = 0x4, offset = 0x4, fixed_abs, tag = 'smem constant byte address 0x4 - core index']
  #allocation1 [shape = 'u32[72,128]{1,0:T(1,128)}', space=vmem, size = 0x9000, scoped, tag = 'internal scratch']
  %s0 = inlined_call_operand.vmem [shape: bf16[16,8], index: 0, kind: input, shape index: {}]
  %s1 = inlined_call_operand.vmem [shape: bf16[8,16], index: 1, kind: input, shape index: {}]
  %s2 = inlined_call_operand.vmem [shape: bf16[2,8,128], index: 2, kind: input, shape index: {}]
  %s3 = inlined_call_operand.vmem [shape: bf16[2,8,2], index: 3, kind: input, shape index: {}]
  %s4 = inlined_call_operand.vmem [shape: bf16[2,2,8], index: 4, kind: input, shape index: {}]
  %s5 = inlined_call_operand.hbm [shape: bf16[2,16,128], index: 5, kind: output, shape index: {0}]
  %s6 = inlined_call_operand.vmem [shape: f32[2,16,2], index: 6, kind: output, shape index: {1}]
  %s7 = inlined_call_operand.hbm [shape: f32[2,2,16], index: 7, kind: output, shape index: {2}]
  %8 = xla_tuple %s5, %s6, %s7
  %s9 = sld [smem:[#allocation0]]
  $region69: #{tpu_custom_call.1} parent=0
    _
  %s11 = ssub.s32 1, %s9
  %s12 = scalar_select 0, %s11, %s9
  $region1: #{tpu_custom_call.1} parent=0
    #allocation2 [shape = 'u8[8192]{0}', space=vmem, size = 0x2000, scoped, tag = 'output window, operand 0']
    #allocation3 [shape = 's32[2]{0}', space=sflag, size = 0x8, scoped, tag = 'scoped memory for tpu_custom_call.1']
    #allocation4 [shape = 'u8[2048]{0}', space=vmem, size = 0x800, scoped, tag = 'output window, operand 2']
    #allocation5 [shape = 's32[2]{0}', space=sflag, size = 0x8, scoped, tag = 'scoped memory for tpu_custom_call.1']
    %13 = vsyncpa [#allocation3], 0
    %s14 = scalar_lea.sflag [#allocation3], 1
    %15 = vsyncpa %s14, 0
    %16 = vsyncpa [#allocation5], 0
    %s17 = scalar_lea.sflag [#allocation5], 1
    %18 = vsyncpa %s17, 0
    loop: start=0, step=1, limit=4
    $region2: #{tpu_custom_call.1} parent=1 // loop_pre_header
      _
    $region3: #{tpu_custom_call.1} parent=1 // loop_header
      %s20 = sphi 0, %s24
      %p21 = scmp.ge.s32.totalorder %s20, 4
      %s27 = sphi 0, %s39
      %s28 = sphi 0, %s35
      %s29 = sphi 0, %s27
      %s30 = sphi 0, %s28
      %s31 = sphi 0, %s29
      %s32 = sphi 0, %s30
      %s42 = sphi 0, %s44
      %s45 = sphi 0, %s42
      %s46 = sphi 0, %s45
      %s62 = sphi 0, %s46
      %s68 = sphi 0, %s70
      %s71 = sphi 0, %s68
      %s72 = sphi 0, %s71
      %s88 = sphi 0, %s72
      %s94 = sphi 0, %s96
      %s97 = sphi 0, %s94
      %s98 = sphi 0, %s97
      %s114 = sphi 0, %s98
      %s120 = sphi 0, %s122
      %s123 = sphi 0, %s120
      %s124 = sphi 0, %s123
      %s140 = sphi 0, %s124
      %s146 = sphi 0, %s148
      %s149 = sphi 0, %s146
      %s150 = sphi 0, %s149
      %s166 = sphi 0, %s150
      %s174 = sphi 0, %s176
      %s177 = sphi 0, %s174
      %s178 = sphi 0, %s177
      %s194 = sphi 0, %s178
      %s202 = sphi 0, %s204
      %s205 = sphi 0, %s202
      %s206 = sphi 0, %s205
      %s222 = sphi 0, %s206
      %s230 = sphi 0, %s232
      %s233 = sphi 0, %s230
      %s234 = sphi 0, %s233
      %s250 = sphi 0, %s234
    $region4: #{tpu_custom_call.1} parent=1 // loop_header_branch
      %23 = sbr.rel (%p21) target = $region8
    $region5: #{tpu_custom_call.1} parent=1 // loop_body
      %s25 = ssub.s32 %s20, 1
      %s26 = ssub.s32 %s20, 2
      %s33 = sadd.s32 1, %s28
      %p34 = scmp.ge.s32.totalorder %s33, 1
      %s35 = scalar_select %p34, 0, %s33
      %s36 = sadd.s32 1, %s27
      %s37 = scalar_select %p34, %s36, %s27
      %p38 = scmp.ge.s32.totalorder %s37, 2
      %s39 = scalar_select %p38, 0, %s37
      %s40 = ssub.s32 %s28, %s35
      %p41 = scmp.eq.s32.totalorder %s40, 0
      %s43 = sadd.s32 %s42, 1
      %s44 = scalar_select %p41, %s42, %s43
      %p47 = pneg %p41
      %p48 = scmp.eq.s32.totalorder %s20, 1
      %p49 = por %p47, %p48
      %p50 = scmp.ne.s32.totalorder %s42, %s45
      %p51 = scmp.eq.s32.totalorder %s20, 0
      %p52 = por %p50, %p51
      %p53 = scmp.ne.s32.totalorder %s42, %s45
      %p54 = scmp.eq.s32.totalorder %s25, 1
      %p55 = por %p53, %p54
      %p56 = scmp.ne.s32.totalorder %s45, %s46
      %p57 = scmp.eq.s32.totalorder %s25, 0
      %p58 = por %p56, %p57
      %p59 = scmp.ne.s32.totalorder %s45, %s46
      %p60 = scmp.eq.s32.totalorder %s26, 1
      %p61 = por %p59, %p60
      %p63 = scmp.ne.s32.totalorder %s46, %s62
      %p64 = scmp.eq.s32.totalorder %s26, 0
      %p65 = por %p63, %p64
      %s66 = ssub.s32 %s28, %s35
      %p67 = scmp.eq.s32.totalorder %s66, 0
      %s69 = sadd.s32 %s68, 1
      %s70 = scalar_select %p67, %s68, %s69
      %p73 = pneg %p67
      %p74 = scmp.eq.s32.totalorder %s20, 1
      %p75 = por %p73, %p74
      %p76 = scmp.ne.s32.totalorder %s68, %s71
      %p77 = scmp.eq.s32.totalorder %s20, 0
      %p78 = por %p76, %p77
      %p79 = scmp.ne.s32.totalorder %s68, %s71
      %p80 = scmp.eq.s32.totalorder %s25, 1
      %p81 = por %p79, %p80
      %p82 = scmp.ne.s32.totalorder %s71, %s72
      %p83 = scmp.eq.s32.totalorder %s25, 0
      %p84 = por %p82, %p83
      %p85 = scmp.ne.s32.totalorder %s71, %s72
      %p86 = scmp.eq.s32.totalorder %s26, 1
      %p87 = por %p85, %p86
      %p89 = scmp.ne.s32.totalorder %s72, %s88
      %p90 = scmp.eq.s32.totalorder %s26, 0
      %p91 = por %p89, %p90
      %s92 = ssub.s32 %s27, %s39
      %p93 = scmp.eq.s32.totalorder %s92, 0
      %s95 = sadd.s32 %s94, 1
      %s96 = scalar_select %p93, %s94, %s95
      %p99 = pneg %p93
      %p100 = scmp.eq.s32.totalorder %s20, 1
      %p101 = por %p99, %p100
      %p102 = scmp.ne.s32.totalorder %s94, %s97
      %p103 = scmp.eq.s32.totalorder %s20, 0
      %p104 = por %p102, %p103
      %p105 = scmp.ne.s32.totalorder %s94, %s97
      %p106 = scmp.eq.s32.totalorder %s25, 1
      %p107 = por %p105, %p106
      %p108 = scmp.ne.s32.totalorder %s97, %s98
      %p109 = scmp.eq.s32.totalorder %s25, 0
      %p110 = por %p108, %p109
      %p111 = scmp.ne.s32.totalorder %s97, %s98
      %p112 = scmp.eq.s32.totalorder %s26, 1
      %p113 = por %p111, %p112
      %p115 = scmp.ne.s32.totalorder %s98, %s114
      %p116 = scmp.eq.s32.totalorder %s26, 0
      %p117 = por %p115, %p116
      %s118 = ssub.s32 %s27, %s39
      %p119 = scmp.eq.s32.totalorder %s118, 0
      %s121 = sadd.s32 %s120, 1
      %s122 = scalar_select %p119, %s120, %s121
      %p125 = pneg %p119
      %p126 = scmp.eq.s32.totalorder %s20, 1
      %p127 = por %p125, %p126
      %p128 = scmp.ne.s32.totalorder %s120, %s123
      %p129 = scmp.eq.s32.totalorder %s20, 0
      %p130 = por %p128, %p129
      %p131 = scmp.ne.s32.totalorder %s120, %s123
      %p132 = scmp.eq.s32.totalorder %s25, 1
      %p133 = por %p131, %p132
      %p134 = scmp.ne.s32.totalorder %s123, %s124
      %p135 = scmp.eq.s32.totalorder %s25, 0
      %p136 = por %p134, %p135
      %p137 = scmp.ne.s32.totalorder %s123, %s124
      %p138 = scmp.eq.s32.totalorder %s26, 1
      %p139 = por %p137, %p138
      %p141 = scmp.ne.s32.totalorder %s124, %s140
      %p142 = scmp.eq.s32.totalorder %s26, 0
      %p143 = por %p141, %p142
      %s144 = ssub.s32 %s27, %s39
      %p145 = scmp.eq.s32.totalorder %s144, 0
      %s147 = sadd.s32 %s146, 1
      %s148 = scalar_select %p145, %s146, %s147
      %p151 = pneg %p145
      %p152 = scmp.eq.s32.totalorder %s20, 1
      %p153 = por %p151, %p152
      %p154 = scmp.ne.s32.totalorder %s146, %s149
      %p155 = scmp.eq.s32.totalorder %s20, 0
      %p156 = por %p154, %p155
      %p157 = scmp.ne.s32.totalorder %s146, %s149
      %p158 = scmp.eq.s32.totalorder %s25, 1
      %p159 = por %p157, %p158
      %p160 = scmp.ne.s32.totalorder %s149, %s150
      %p161 = scmp.eq.s32.totalorder %s25, 0
      %p162 = por %p160, %p161
      %p163 = scmp.ne.s32.totalorder %s149, %s150
      %p164 = scmp.eq.s32.totalorder %s26, 1
      %p165 = por %p163, %p164
      %p167 = scmp.ne.s32.totalorder %s150, %s166
      %p168 = scmp.eq.s32.totalorder %s26, 0
      %p169 = por %p167, %p168
      %s170 = ssub.s32 %s27, %s39
      %s171 = ssub.s32 %s28, %s35
      %s172 = sor.u32 %s170, %s171
      %p173 = scmp.eq.s32.totalorder %s172, 0
      %s175 = sadd.s32 %s174, 1
      %s176 = scalar_select %p173, %s174, %s175
      %p179 = pneg %p173
      %p180 = scmp.eq.s32.totalorder %s20, 1
      %p181 = por %p179, %p180
      %p182 = scmp.ne.s32.totalorder %s174, %s177
      %p183 = scmp.eq.s32.totalorder %s20, 0
      %p184 = por %p182, %p183
      %p185 = scmp.ne.s32.totalorder %s174, %s177
      %p186 = scmp.eq.s32.totalorder %s25, 1
      %p187 = por %p185, %p186
      %p188 = scmp.ne.s32.totalorder %s177, %s178
      %p189 = scmp.eq.s32.totalorder %s25, 0
      %p190 = por %p188, %p189
      %p191 = scmp.ne.s32.totalorder %s177, %s178
      %p192 = scmp.eq.s32.totalorder %s26, 1
      %p193 = por %p191, %p192
      %p195 = scmp.ne.s32.totalorder %s178, %s194
      %p196 = scmp.eq.s32.totalorder %s26, 0
      %p197 = por %p195, %p196
      %s198 = ssub.s32 %s27, %s39
      %s199 = ssub.s32 %s28, %s35
      %s200 = sor.u32 %s198, %s199
      %p201 = scmp.eq.s32.totalorder %s200, 0
      %s203 = sadd.s32 %s202, 1
      %s204 = scalar_select %p201, %s202, %s203
      %p207 = pneg %p201
      %p208 = scmp.eq.s32.totalorder %s20, 1
      %p209 = por %p207, %p208
      %p210 = scmp.ne.s32.totalorder %s202, %s205
      %p211 = scmp.eq.s32.totalorder %s20, 0
      %p212 = por %p210, %p211
      %p213 = scmp.ne.s32.totalorder %s202, %s205
      %p214 = scmp.eq.s32.totalorder %s25, 1
      %p215 = por %p213, %p214
      %p216 = scmp.ne.s32.totalorder %s205, %s206
      %p217 = scmp.eq.s32.totalorder %s25, 0
      %p218 = por %p216, %p217
      %p219 = scmp.ne.s32.totalorder %s205, %s206
      %p220 = scmp.eq.s32.totalorder %s26, 1
      %p221 = por %p219, %p220
      %p223 = scmp.ne.s32.totalorder %s206, %s222
      %p224 = scmp.eq.s32.totalorder %s26, 0
      %p225 = por %p223, %p224
      %s226 = ssub.s32 %s27, %s39
      %s227 = ssub.s32 %s28, %s35
      %s228 = sor.u32 %s226, %s227
      %p229 = scmp.eq.s32.totalorder %s228, 0
      %s231 = sadd.s32 %s230, 1
      %s232 = scalar_select %p229, %s230, %s231
      %p235 = pneg %p229
      %p236 = scmp.eq.s32.totalorder %s20, 1
      %p237 = por %p235, %p236
      %p238 = scmp.ne.s32.totalorder %s230, %s233
      %p239 = scmp.eq.s32.totalorder %s20, 0
      %p240 = por %p238, %p239
      %p241 = scmp.ne.s32.totalorder %s230, %s233
      %p242 = scmp.eq.s32.totalorder %s25, 1
      %p243 = por %p241, %p242
      %p244 = scmp.ne.s32.totalorder %s233, %s234
      %p245 = scmp.eq.s32.totalorder %s25, 0
      %p246 = por %p244, %p245
      %p247 = scmp.ne.s32.totalorder %s233, %s234
      %p248 = scmp.eq.s32.totalorder %s26, 1
      %p249 = por %p247, %p248
      %p251 = scmp.ne.s32.totalorder %s234, %s250
      %p252 = scmp.eq.s32.totalorder %s26, 0
      %p253 = por %p251, %p252
      %p254 = scmp.le.s32.totalorder 1, %s20
      %p255 = scmp.lt.s32.totalorder %s20, 3
      %p256 = pnand %p254, %p255
      %p257 = pneg %p256
      // Predicated region
      $region9: #{tpu_custom_call.1} parent=5 // pred_check
        _
      $region10: #{tpu_custom_call.1} parent=5 // pred_check_branch
        %259 = sbr.rel (%p256) target = $region12
      $region11: #{tpu_custom_call.1} parent=5 // pred_region
        %s260 = ssub.s32 %s20, 1
        // Predicated region
        $region13: #{tpu_custom_call.1} parent=11 // pred_check
          %p261 = pneg %p58
        $region14: #{tpu_custom_call.1} parent=11 // pred_check_branch
          %263 = sbr.rel (%p261) target = $region16
        $region15: #{tpu_custom_call.1} parent=11 // pred_region
          %s264 = smul.u32 2, %s30
          %p265 = scmp.lt.s32.totalorder %s264, 1
          %s266 = scalar_select %p265, %s264, 1
          %s267 = smul.addr %s266, 4
          %s268 = scalar_lea.vmem %s0, %s267
          %s269 = smul.u32 2, %s30
        $region16: #{tpu_custom_call.1} parent=11 // pred_fallthru
          _
        // Predicated region
        $region17: #{tpu_custom_call.1} parent=11 // pred_check
          %p270 = pneg %p84
        $region18: #{tpu_custom_call.1} parent=11 // pred_check_branch
          %272 = sbr.rel (%p270) target = $region20
        $region19: #{tpu_custom_call.1} parent=11 // pred_region
          %p273 = scmp.lt.s32.totalorder %s30, 0
          %s274 = scalar_select %p273, %s30, 0
          %s275 = smul.addr %s274, 4
          %s276 = scalar_lea.vmem %s1, %s275
        $region20: #{tpu_custom_call.1} parent=11 // pred_fallthru
          _
      $region12: #{tpu_custom_call.1} parent=5 // pred_fallthru
        _
      %p277 = scmp.lt.s32.totalorder %s20, 2
      // Predicated region
      $region21: #{tpu_custom_call.1} parent=5 // pred_check
        %p278 = pneg %p277
      $region22: #{tpu_custom_call.1} parent=5 // pred_check_branch
        %280 = sbr.rel (%p278) target = $region24
      $region23: #{tpu_custom_call.1} parent=5 // pred_region
        // Predicated region
        $region25: #{tpu_custom_call.1} parent=23 // pred_check
          %p281 = pneg %p104
        $region26: #{tpu_custom_call.1} parent=23 // pred_check_branch
          %283 = sbr.rel (%p281) target = $region28
        $region27: #{tpu_custom_call.1} parent=23 // pred_region
          %p284 = scmp.lt.s32.totalorder %s27, 1
          %s285 = scalar_select %p284, %s27, 1
          %s286 = smul.addr %s285, 4
          %s287 = scalar_lea.vmem %s2, %s286
        $region28: #{tpu_custom_call.1} parent=23 // pred_fallthru
          _
        // Predicated region
        $region29: #{tpu_custom_call.1} parent=23 // pred_check
          %p288 = pneg %p130
        $region30: #{tpu_custom_call.1} parent=23 // pred_check_branch
          %290 = sbr.rel (%p288) target = $region32
        $region31: #{tpu_custom_call.1} parent=23 // pred_region
          %p291 = scmp.lt.s32.totalorder %s27, 1
          %s292 = scalar_select %p291, %s27, 1
          %s293 = smul.addr %s292, 4
          %s294 = scalar_lea.vmem %s3, %s293
        $region32: #{tpu_custom_call.1} parent=23 // pred_fallthru
          _
        // Predicated region
        $region33: #{tpu_custom_call.1} parent=23 // pred_check
          %p295 = pneg %p156
        $region34: #{tpu_custom_call.1} parent=23 // pred_check_branch
          %297 = sbr.rel (%p295) target = $region36
        $region35: #{tpu_custom_call.1} parent=23 // pred_region
          %p298 = scmp.lt.s32.totalorder %s27, 1
          %s299 = scalar_select %p298, %s27, 1
          %s300 = scalar_lea.vmem %s4, %s299
        $region36: #{tpu_custom_call.1} parent=23 // pred_fallthru
          _
      $region24: #{tpu_custom_call.1} parent=5 // pred_fallthru
        _
      %p301 = scmp.le.s32.totalorder 1, %s20
      %p302 = scmp.lt.s32.totalorder %s20, 3
      %p303 = pnand %p301, %p302
      %p304 = pneg %p303
      // Predicated region
      $region37: #{tpu_custom_call.1} parent=5 // pred_check
        _
      $region38: #{tpu_custom_call.1} parent=5 // pred_check_branch
        %306 = sbr.rel (%p303) target = $region40
      $region39: #{tpu_custom_call.1} parent=5 // pred_region
        %s307 = ssub.s32 %s20, 1
        %s308 = smul.u32 2, %s30
        %p309 = scmp.lt.s32.totalorder %s308, 1
        %s310 = scalar_select %p309, %s308, 1
        %s311 = smul.addr %s310, 4
        %s312 = scalar_lea.vmem %s0, %s311
        %p313 = pneg %p58
        %p314 = pneg %p55
        %p315 = scmp.lt.s32.totalorder %s30, 0
        %s316 = scalar_select %p315, %s30, 0
        %s317 = smul.addr %s316, 4
        %s318 = scalar_lea.vmem %s1, %s317
        %p319 = pneg %p84
        %p320 = pneg %p81
        %p321 = scmp.lt.s32.totalorder %s29, 1
        %s322 = scalar_select %p321, %s29, 1
        %s323 = smul.addr %s322, 4
        %s324 = scalar_lea.vmem %s2, %s323
        %p325 = pneg %p110
        %p326 = pneg %p107
        %p327 = scmp.lt.s32.totalorder %s29, 1
        %s328 = scalar_select %p327, %s29, 1
        %s329 = smul.addr %s328, 4
        %s330 = scalar_lea.vmem %s3, %s329
        %p331 = pneg %p136
        %p332 = pneg %p133
        %p333 = scmp.lt.s32.totalorder %s29, 1
        %s334 = scalar_select %p333, %s29, 1
        %s335 = scalar_lea.vmem %s4, %s334
        %p336 = pneg %p162
        %p337 = pneg %p159
        %p338 = pneg %p190
        %p339 = pneg %p187
        %s340 = sand.u32 %s177, 1
        %s341 = scalar_lea.sflag [#allocation3], %s340
        %s342 = sand.u32 %s177, 1
        %s343 = smul.addr %s342, 8
        %s344 = scalar_lea.vmem [#allocation2], %s343
        %p345 = pneg %p218
        %p346 = pneg %p215
        %s347 = smul.u32 2, %s30
        %p348 = scmp.lt.s32.totalorder %s29, 1
        %s349 = scalar_select %p348, %s29, 1
        %p350 = scmp.lt.s32.totalorder %s347, 1
        %s351 = scalar_select %p350, %s347, 1
        %s352 = smul.addr %s349, 2
        %s353 = sadd.s32 %s351, %s352
        %s354 = smul.addr %s353, 8
        %s355 = scalar_lea.vmem %s6, %s354
        %p356 = pneg %p246
        %p357 = pneg %p243
        %s358 = sand.u32 %s233, 1
        %s359 = scalar_lea.sflag [#allocation5], %s358
        %s360 = sand.u32 %s233, 1
        %s361 = smul.addr %s360, 2
        %s362 = scalar_lea.vmem [#allocation4], %s361
        %s363 = smul.u32 2, %s30
        %p364 = scmp.lt.s32.totalorder %s363, 1
        %s365 = scalar_select %p364, %s363, 1
        %s366 = smul.addr %s365, 4
        %s367 = scalar_lea.vmem %s0, %s366
        %s368 = smul.u32 2, %s30
        %p369 = scmp.lt.s32.totalorder %s30, 0
        %s370 = scalar_select %p369, %s30, 0
        %s371 = smul.addr %s370, 4
        %s372 = scalar_lea.vmem %s1, %s371
        %p373 = scmp.lt.s32.totalorder %s29, 1
        %s374 = scalar_select %p373, %s29, 1
        %s375 = smul.addr %s374, 4
        %s376 = scalar_lea.vmem %s2, %s375
        %p377 = scmp.lt.s32.totalorder %s29, 1
        %s378 = scalar_select %p377, %s29, 1
        %s379 = smul.addr %s378, 4
        %s380 = scalar_lea.vmem %s3, %s379
        %p381 = scmp.lt.s32.totalorder %s29, 1
        %s382 = scalar_select %p381, %s29, 1
        %s383 = scalar_lea.vmem %s4, %s382
        %s384 = smul.u32 2, %s30
        %s385 = smul.u32 2, %s30
        %p386 = scmp.lt.s32.totalorder %s29, 1
        %s387 = scalar_select %p386, %s29, 1
        %p388 = scmp.lt.s32.totalorder %s385, 1
        %s389 = scalar_select %p388, %s385, 1
        %s390 = smul.addr %s387, 2
        %s391 = sadd.s32 %s389, %s390
        %s392 = smul.addr %s391, 8
        %s393 = scalar_lea.vmem %s6, %s392
        %s394 = smul.u32 2, %s30
        %v396 = vld [vmem:[%s367] sm:$0xf]
        %v397 = vld [vmem:[%s367 + $0x4] sm:$0xf]
        %v398 = vld [vmem:[%s376] sm:$0xf]
        %v401 = vunpack.c.l.b16 %v396
        %v402 = vunpack.c.l.b16 %v397
        %v403 = vpack.c.b16 %v402, %v401
        %vm404 = vcmask 64512
        %v406 = vsel %vm404, %v403, 0
        %vm408 = vcmask 1043456
        %v410 = vsel %vm408, %v398, 0
        %412 = vmatpush.bf16.msra.mxu0 0
        %413 = vmatpush.bf16.msra.mxu0 0
        %414 = vmatpush.bf16.msra.mxu0 0
        %415 = vmatpush.bf16.msra.mxu0 0
        %416 = vmatpush.bf16.msra.mxu0 0
        %417 = vmatpush.bf16.msra.mxu0 0
        %418 = vmatpush.bf16.msra.mxu0 0
        %419 = vmatpush.bf16.msra.mxu0 %v410
        %420 = vmatmul.bf16.gmra.mxu0 %v406
        %v421 = vpop.f32.mrf.mxu0
        %v422 = vadd.f32 0.0, %v421
        %v423 = vpop.f32.mrf.mxu0
        %v424 = vadd.f32 0.0, %v423
        %425 = vdwg.mxu0
        %v426 = vpack.c.bf16 %v422, %v422
        %v427 = vpack.c.bf16 %v424, %v424
        %428 = vst [vmem:[%s344] sm:$0xf] %v426
        %429 = vst [vmem:[%s344 + $0x4] sm:$0xf] %v427
        %v430 = vld [vmem:[%s380] sm:$0xf]
        %v432 = vsel %vm408, %v430, 0
        %434 = vmatpush.bf16.msra.mxu0 0
        %435 = vmatpush.bf16.msra.mxu0 0
        %436 = vmatpush.bf16.msra.mxu0 0
        %437 = vmatpush.bf16.msra.mxu0 0
        %438 = vmatpush.bf16.msra.mxu0 0
        %439 = vmatpush.bf16.msra.mxu0 0
        %440 = vmatpush.bf16.msra.mxu0 0
        %441 = vmatpush.bf16.msra.mxu0 %v432
        %442 = vmatmul.bf16.gmra.mxu0 %v406
        %v443 = vpop.f32.mrf.mxu0
        %v444 = vadd.f32 0.0, %v443
        %v445 = vpop.f32.mrf.mxu0
        %v446 = vadd.f32 0.0, %v445
        %447 = vdwg.mxu0
        %vm448 = vcmask 15360
        %449 = vst.msk [vmem:[%s393] sm:$0xff] %vm448, %v444
        %450 = vst.msk [vmem:[%s393 + $0x8] sm:$0xff] %vm448, %v446
        %v451 = vld [vmem:[%s383] sm:$0x1]
        %v452 = vld [vmem:[%s372] sm:$0xf]
        %v454 = vsel %vm404, %v451, 0
        %v457 = vsel %vm408, %v452, 0
        %459 = vmatpush.bf16.msra.mxu0 0
        %460 = vmatpush.bf16.msra.mxu0 0
        %461 = vmatpush.bf16.msra.mxu0 0
        %462 = vmatpush.bf16.msra.mxu0 0
        %463 = vmatpush.bf16.msra.mxu0 0
        %464 = vmatpush.bf16.msra.mxu0 0
        %465 = vmatpush.bf16.msra.mxu0 0
        %466 = vmatpush.bf16.msra.mxu0 %v457
        %467 = vmatmul.bf16.gmra.mxu0 %v454
        %v468 = vpop.f32.mrf.mxu0
        %v469 = vadd.f32 0.0, %v468
        %v470 = vpop.f32.mrf.mxu0
        %471 = vdwg.mxu0
        %vm472 = vcmask 123904
        %473 = vst.msk [vmem:[%s362] sm:$0x3] %vm472, %v469
        %s474 = sand.u32 %s177, 1
        %s475 = scalar_lea.sflag [#allocation3], %s474
        %s476 = sand.u32 %s177, 1
        %s477 = smul.addr %s476, 8
        %s478 = scalar_lea.vmem [#allocation2], %s477
        %s479 = smul.u32 2, %s30
        %p480 = scmp.lt.s32.totalorder %s29, 1
        %s481 = scalar_select %p480, %s29, 1
        %p482 = scmp.lt.s32.totalorder %s479, 1
        %s483 = scalar_select %p482, %s479, 1
        %s484 = smul.addr %s481, 2
        %s485 = sadd.s32 %s483, %s484
        %s486 = smul.addr %s485, 8
        %s487 = scalar_lea.vmem %s6, %s486
        %s488 = sand.u32 %s233, 1
        %s489 = scalar_lea.sflag [#allocation5], %s488
        %s490 = sand.u32 %s233, 1
        %s491 = smul.addr %s490, 2
        %s492 = scalar_lea.vmem [#allocation4], %s491
        // Predicated region
        $region41: #{tpu_custom_call.1} parent=39 // pred_check
          %p493 = pneg %p187
        $region42: #{tpu_custom_call.1} parent=39 // pred_check_branch
          %495 = sbr.rel (%p493) target = $region44
        $region43: #{tpu_custom_call.1} parent=39 // pred_region
          %s496 = smul.u32 2, %s30
          %498 = vsyncadd %s475, 0
          %s499 = smul.addr %s29, 2
          %s500 = sadd.s32 %s496, %s499
          %s501 = smul.addr %s500, 4
          %s502 = scalar_lea.hbm %s5, %s501
          %s503 = sshll.u32 %s478, 4
          %s504 = int_to_ptr.vmem [resolvable:$true] %s503
          %s505 = sshll.u32 %s502, 4
          %s506 = int_to_ptr.hbm [resolvable:$true] %s505
          %511 = dma.vmem_to_hbm [thread:$0]  %s504, 128, %s506, %s475, 64, 64, 4
        $region44: #{tpu_custom_call.1} parent=39 // pred_fallthru
          _
        // Predicated region
        $region45: #{tpu_custom_call.1} parent=39 // pred_check
          %p512 = pneg %p215
        $region46: #{tpu_custom_call.1} parent=39 // pred_check_branch
          %514 = sbr.rel (%p512) target = $region48
        $region47: #{tpu_custom_call.1} parent=39 // pred_region
          %s515 = smul.u32 2, %s30
        $region48: #{tpu_custom_call.1} parent=39 // pred_fallthru
          _
        // Predicated region
        $region49: #{tpu_custom_call.1} parent=39 // pred_check
          %p516 = pneg %p243
        $region50: #{tpu_custom_call.1} parent=39 // pred_check_branch
          %518 = sbr.rel (%p516) target = $region52
        $region51: #{tpu_custom_call.1} parent=39 // pred_region
          %520 = vsyncadd %s489, 0
          %s521 = sadd.s32 %s30, %s29
          %s522 = smul.addr %s521, 2
          %s523 = scalar_lea.hbm %s7, %s522
          %s525 = sshll.u32 %s492, 4
          %s526 = int_to_ptr.vmem [resolvable:$true] %s525
          %s527 = sshll.u32 %s523, 4
          %s528 = int_to_ptr.hbm [resolvable:$true] %s527
          %530 = dma.vmem_to_hbm [thread:$0]  %s526, 32, %s528, %s489
        $region52: #{tpu_custom_call.1} parent=39 // pred_fallthru
          _
      $region40: #{tpu_custom_call.1} parent=5 // pred_fallthru
        _
      %p531 = scmp.le.s32.totalorder 2, %s20
      // Predicated region
      $region53: #{tpu_custom_call.1} parent=5 // pred_check
        %p532 = pneg %p531
      $region54: #{tpu_custom_call.1} parent=5 // pred_check_branch
        %534 = sbr.rel (%p532) target = $region56
      $region55: #{tpu_custom_call.1} parent=5 // pred_region
        %s535 = ssub.s32 %s20, 2
        // Predicated region
        $region57: #{tpu_custom_call.1} parent=55 // pred_check
          %p536 = pneg %p193
        $region58: #{tpu_custom_call.1} parent=55 // pred_check_branch
          %538 = sbr.rel (%p536) target = $region60
        $region59: #{tpu_custom_call.1} parent=55 // pred_region
          %s539 = sand.u32 %s178, 1
          %s540 = scalar_lea.sflag [#allocation3], %s539
          %s541 = sand.u32 %s178, 1
          %s542 = smul.addr %s541, 8
          %s543 = scalar_lea.vmem [#allocation2], %s542
          %545 = dma.done %s540, 128
        $region60: #{tpu_custom_call.1} parent=55 // pred_fallthru
          _
        // Predicated region
        $region61: #{tpu_custom_call.1} parent=55 // pred_check
          %p546 = pneg %p221
        $region62: #{tpu_custom_call.1} parent=55 // pred_check_branch
          %548 = sbr.rel (%p546) target = $region64
        $region63: #{tpu_custom_call.1} parent=55 // pred_region
          %s549 = smul.u32 2, %s32
          %p550 = scmp.lt.s32.totalorder %s31, 1
          %s551 = scalar_select %p550, %s31, 1
          %p552 = scmp.lt.s32.totalorder %s549, 1
          %s553 = scalar_select %p552, %s549, 1
          %s554 = smul.addr %s551, 2
          %s555 = sadd.s32 %s553, %s554
          %s556 = smul.addr %s555, 8
          %s557 = scalar_lea.vmem %s6, %s556
        $region64: #{tpu_custom_call.1} parent=55 // pred_fallthru
          _
        // Predicated region
        $region65: #{tpu_custom_call.1} parent=55 // pred_check
          %p558 = pneg %p249
        $region66: #{tpu_custom_call.1} parent=55 // pred_check_branch
          %560 = sbr.rel (%p558) target = $region68
        $region67: #{tpu_custom_call.1} parent=55 // pred_region
          %s561 = sand.u32 %s234, 1
          %s562 = scalar_lea.sflag [#allocation5], %s561
          %s563 = sand.u32 %s234, 1
          %s564 = smul.addr %s563, 2
          %s565 = scalar_lea.vmem [#allocation4], %s564
          %567 = dma.done %s562, 32
        $region68: #{tpu_custom_call.1} parent=55 // pred_fallthru
          _
      $region56: #{tpu_custom_call.1} parent=5 // pred_fallthru
        _
    $region6: #{tpu_custom_call.1} parent=1 // loop_footer
      %s24 = sadd.s32 1, %s20
    $region7: #{tpu_custom_call.1} parent=1 // loop_footer_branch
      %19 = sbr.rel target = $region3
    $region8: #{tpu_custom_call.1} parent=1 // loop_exit
      _
    %568 = vsyncpa [#allocation3], 1
    %s569 = scalar_lea.sflag [#allocation3], 1
    %570 = vsyncpa %s569, 1
    %571 = vsyncpa [#allocation5], 1
    %s572 = scalar_lea.sflag [#allocation5], 1
    %573 = vsyncpa %s572, 1

</llo_original>
